<compile_context>
chip_gen: v7x
topology: tpu7x:2x2x1
jax: 0.10.0
libtpu: 0.0.40
codegen_flags: <defaults>
</compile_context>

<pallas_src>
import jax
import jax.numpy as jnp
from jax.experimental import pallas as pl
from jax.experimental.pallas import tpu as pltpu


def _round_up(x, m):
    return ((x + m - 1) // m) * m


def _cdiv(a, b):
    return (a + b - 1) // b


# ----------------------------- Pallas kernel ------------------------------ #
def _make_ilmcnn_kernel(bt, l_out_pad, l_out, ks, v_pad):
    btl = bt * l_out_pad

    def kernel(tok_ref, wfold_ref, bconv_ref, w1_ref, b1_ref, w2_ref, b2_ref,
               out_ref):
        # tok_ref  : (btl, ks)     int32   one-hot column j*v_pad + token[b, t+j]
        # wfold_ref: (ks*v_pad, K) bf16    row j*v_pad+v = emb_table[v] @ wconv[j]
        # bconv_ref: (1, K)        f32
        # w1_ref   : (K, H)        bf16
        # b1_ref   : (1, H)        f32
        # w2_ref   : (H, C_pad)    bf16
        # b2_ref   : (1, C_pad)    f32
        # out_ref  : (bt, C_pad)   f32
        k = wfold_ref.shape[1]

        # Fused embedding-gather + Conv1d: a single bf16 MXU matmul of the
        # one-hot rows against the folded (table @ conv-tap) weights.  The
        # one-hot is accumulated as booleans (column offsets per tap can never
        # collide, so OR == sum) and cast to bf16 exactly once.
        # TODO(synk): the iota could live in a persistent VMEM scratch, but a
        # program_id==0 init guard is not megacore-safe under a "parallel"
        # grid axis, so it is regenerated per step (cheap at this size).
        cols = jax.lax.broadcasted_iota(jnp.int32, (btl, ks * v_pad), 1)
        mask = cols == tok_ref[:, 0:1]
        for j in range(1, ks):                      # ks is small & static -> unrolled
            mask = mask | (cols == tok_ref[:, j:j + 1])
        onehot = mask.astype(jnp.bfloat16)
        conv = jnp.dot(onehot, wfold_ref[...],
                       preferred_element_type=jnp.float32)        # (btl, K) f32

        # Global max-pool over time.  Rows t >= l_out are padding: force them
        # to -inf inside the reduce (no sublane-unaligned slice / copy).  Bias
        # and ReLU are monotone & time-invariant, so they commute with the max
        # and are applied once on the pooled (bt, K) tensor (exact).
        # TODO(synk): for very large L this should become a time-chunked
        # running max; unnecessary at peptide-scale L.
        conv = conv.reshape(bt, l_out_pad, k)
        t_iota = jax.lax.broadcasted_iota(jnp.int32, (bt, l_out_pad, k), 1)
        pooled = jnp.max(jnp.where(t_iota < l_out, conv, -jnp.inf), axis=1)
        pooled = jnp.maximum(pooled + bconv_ref[...], 0.0)         # (bt, K)

        # fc1 + ReLU.  nn.Dropout is identity in eval mode.
        h = jnp.dot(pooled.astype(jnp.bfloat16), w1_ref[...],
                    preferred_element_type=jnp.float32) + b1_ref[...]
        h = jnp.maximum(h, 0.0)

        # fc2, lane-padded to C_pad = 128 columns (unmasked stores).
        out = jnp.dot(h.astype(jnp.bfloat16), w2_ref[...],
                      preferred_element_type=jnp.float32) + b2_ref[...]
        out_ref[...] = out.astype(out_ref.dtype)

    return kernel


# ---------------------------- tiling heuristics ----------------------------- #
def _choose_batch_tile(B, l_out_pad, *, block_b=128, max_rows=16384):
    """Batch tile: multiple of 8, btl VMEM-capped, and >= 2 blocks whenever
    B > 8 so both v7x TensorCores get work under a 'parallel' grid axis."""
    cap = min(block_b, max(8, (max_rows // l_out_pad) // 8 * 8))
    target_blocks = 2 if B > 8 else 1
    bt = min(cap, max(8, _round_up(_cdiv(B, target_blocks), 8)))
    n_blocks = _cdiv(B, bt)
    # Re-balance into near-equal multiples of 8 -> padding waste < 8 rows/block.
    bt = min(cap, max(8, _round_up(_cdiv(B, n_blocks), 8)))
    return bt


# ------------------------- one-time parameter prep -------------------------- #
def fold_params(params):
    """Fold the embedding table into the conv taps and pre-cast / pre-pad all
    weights.  Run once -- only cheap token prep remains in the per-call path."""
    table = params["embedding"]            # (V, E) f32
    wconv = params["wconv"]                # (ks, E, K) f32
    V, E = table.shape
    ks, _, K = wconv.shape
    H = params["w1"].shape[1]
    C = params["w2"].shape[1]
    v_pad = _round_up(V, 8)
    c_pad = _round_up(max(C, 128), 128)    # lane-dense output slab

    table_pad = jnp.pad(table, ((0, v_pad - V), (0, 0)))
    # Row j*v_pad + v of wfold is emb_table[v, :] @ wconv[j] -> (K,).
    wfold = jnp.concatenate([table_pad @ wconv[j] for j in range(ks)],
                            axis=0).astype(jnp.bfloat16)            # (ks*v_pad, K)

    return {
        "wfold": wfold,
        "bconv": params["bconv"].astype(jnp.float32),               # (1, K)
        "w1":    params["w1"].astype(jnp.bfloat16),                  # (K, H)
        "b1":    params["b1"].astype(jnp.float32),                   # (1, H)
        "w2":    jnp.pad(params["w2"], ((0, 0), (0, c_pad - C))).astype(jnp.bfloat16),
        "b2":    jnp.pad(params["b2"], ((0, 0), (0, c_pad - C))).astype(jnp.float32),
        "meta":  dict(V=V, E=E, ks=ks, K=K, H=H, C=C, v_pad=v_pad, c_pad=c_pad),
    }


# -------------------------------- wrapper ---------------------------------- #
def ilmcnn_forward(tokens, folded, *, block_b=128):
    """tokens: (B, L) int. folded: output of fold_params.
    Returns logits (B, num_classes) float32."""
    m = folded["meta"]
    ks, K, H, C = m["ks"], m["K"], m["H"], m["C"]
    v_pad, c_pad = m["v_pad"], m["c_pad"]
    B, L = tokens.shape
    l_out = L - ks + 1
    assert l_out >= 1

    # --- tiling (conv rows based on the OUTPUT length, not L) -------------- #
    l_out_pad = _round_up(l_out, 8)
    bt = _choose_batch_tile(B, l_out_pad, block_b=block_b)
    b_pad = _round_up(B, bt)
    n_blocks = b_pad // bt
    btl = bt * l_out_pad

    # --- per-call token prep (cheap int ops) ------------------------------- #
    tok = jnp.pad(tokens.astype(jnp.int32), ((0, b_pad - B), (0, 0)))  # (b_pad, L)
    # Dense (btl, ks) index plane: entry [b*l_out_pad + t, j] is the one-hot
    # column j*v_pad + token[b, t+j] (tap offset pre-added here, so the kernel
    # does no adds and no sublane shuffles).  Rows t >= l_out are padding and
    # get masked to -inf before the max inside the kernel.
    taps = jnp.stack([tok[:, j:j + l_out] + j * v_pad for j in range(ks)],
                     axis=-1)                                          # (b_pad, l_out, ks)
    taps = jnp.pad(taps, ((0, 0), (0, l_out_pad - l_out), (0, 0)))
    tok_idx = taps.reshape(b_pad * l_out_pad, ks)

    kernel = _make_ilmcnn_kernel(bt, l_out_pad, l_out, ks, v_pad)

    out = pl.pallas_call(
        kernel,
        out_shape=jax.ShapeDtypeStruct((b_pad, c_pad), jnp.float32),
        grid=(n_blocks,),
        in_specs=[
            pl.BlockSpec((btl, ks), lambda b: (b, 0)),           # token columns
            pl.BlockSpec((ks * v_pad, K), lambda b: (0, 0)),     # folded conv weights
            pl.BlockSpec((1, K), lambda b: (0, 0)),              # conv bias
            pl.BlockSpec((K, H), lambda b: (0, 0)),              # fc1 weight
            pl.BlockSpec((1, H), lambda b: (0, 0)),              # fc1 bias
            pl.BlockSpec((H, c_pad), lambda b: (0, 0)),          # fc2 weight (padded)
            pl.BlockSpec((1, c_pad), lambda b: (0, 0)),          # fc2 bias (padded)
        ],
        out_specs=pl.BlockSpec((bt, c_pad), lambda b: (b, 0)),
        compiler_params=pltpu.CompilerParams(
            dimension_semantics=("parallel",),
            vmem_limit_bytes=32 * 1024 * 1024),
    )(tok_idx, folded["wfold"], folded["bconv"], folded["w1"],
      folded["b1"], folded["w2"], folded["b2"])

    return out[:B, :C]


# --------------------------- parameter creation ---------------------------- #
def make_params(key, input_dim, embedding_dim, num_classes, num_kernels,
                kernel_size):
    ks = jax.random.split(key, 7)
    s = 0.05
    # Conv1d weight in PyTorch is (K, E, ks); we store per-tap (ks, E, K).
    return {
        "embedding": s * jax.random.normal(ks[0], (input_dim, embedding_dim), jnp.float32),
        "wconv":     s * jax.random.normal(ks[1], (kernel_size, embedding_dim, num_kernels), jnp.float32),
        "bconv":     s * jax.random.normal(ks[2], (1, num_kernels), jnp.float32),
        "w1":        s * jax.random.normal(ks[3], (num_kernels, 128), jnp.float32),
        "b1":        s * jax.random.normal(ks[4], (1, 128), jnp.float32),
        "w2":        s * jax.random.normal(ks[5], (128, num_classes), jnp.float32),
        "b2":        s * jax.random.normal(ks[6], (1, num_classes), jnp.float32),
    }


# ------------------------------- reference --------------------------------- #
def ilmcnn_reference(tokens, params):
    emb = jnp.take(params["embedding"], tokens, axis=0)           # (B, L, E)
    ks = params["wconv"].shape[0]
    l_out = emb.shape[1] - ks + 1
    conv = sum(
        jnp.einsum("ble,ek->blk", emb[:, j:j + l_out, :], params["wconv"][j])
        for j in range(ks)
    ) + params["bconv"][None, :, :]
    conv = jnp.maximum(conv, 0.0)
    pooled = jnp.max(conv, axis=1)
    h = jnp.maximum(pooled @ params["w1"] + params["b1"], 0.0)
    return h @ params["w2"] + params["b2"]


# ---------------------------------- main ----------------------------------- #
if __name__ == "__main__":
    # Small shapes consistent with the module: vocab=21 (amino acids + pad),
    # embedding_dim=32, num_kernels=64, kernel_size=3, num_classes=2, seq=16.
    B, L = 2, 16
    input_dim, embedding_dim = 21, 32
    num_kernels, kernel_size, num_classes = 64, 3, 2

    key = jax.random.PRNGKey(0)
    kp, kx = jax.random.split(key)
    params = make_params(kp, input_dim, embedding_dim, num_classes,
                         num_kernels, kernel_size)
    tokens = jax.random.randint(kx, (B, L), 0, input_dim, dtype=jnp.int32)

    folded = fold_params(params)                 # one-time parameter prep
    logits = jax.block_until_ready(ilmcnn_forward(tokens, folded))

    ref = ilmcnn_reference(tokens, params)
    assert logits.shape == (B, num_classes)
    # bf16 matmul inputs (f32 accumulation) -> slightly looser tolerance.
    assert jnp.allclose(logits, ref, atol=1e-2, rtol=1e-2), (logits, ref)

    print("KERNEL_OK")
</pallas_src>

<mosaic_0001>
module attributes {stable_mosaic.version = 11 : i64} {
  func.func @kernel(%arg0: i32, %arg1: memref<128x3xi32, #tpu.memory_space<vmem>>, %arg2: memref<72x64xbf16, #tpu.memory_space<vmem>>, %arg3: memref<1x64xf32, #tpu.memory_space<vmem>>, %arg4: memref<64x128xbf16, #tpu.memory_space<vmem>>, %arg5: memref<1x128xf32, #tpu.memory_space<vmem>>, %arg6: memref<128x128xbf16, #tpu.memory_space<vmem>>, %arg7: memref<1x128xf32, #tpu.memory_space<vmem>>, %arg8: memref<8x128xf32, #tpu.memory_space<vmem>>) attributes {dimension_semantics = [#tpu.dimension_semantics<parallel>], iteration_bounds = array<i64: 1>, scalar_prefetch = 0 : i64, scratch_operands = 0 : i64, tpu.core_type = #tpu.core_type<tc>, window_params = [{transform_indices = @transform_0, window_bounds = array<i64: 128, 3>}, {pipeline_mode = #tpu.pipeline_mode<synchronous>, transform_indices = @transform_1, window_bounds = array<i64: 72, 64>}, {pipeline_mode = #tpu.pipeline_mode<synchronous>, transform_indices = @transform_2, window_bounds = array<i64: 1, 64>}, {pipeline_mode = #tpu.pipeline_mode<synchronous>, transform_indices = @transform_3, window_bounds = array<i64: 64, 128>}, {pipeline_mode = #tpu.pipeline_mode<synchronous>, transform_indices = @transform_4, window_bounds = array<i64: 1, 128>}, {pipeline_mode = #tpu.pipeline_mode<synchronous>, transform_indices = @transform_5, window_bounds = array<i64: 128, 128>}, {pipeline_mode = #tpu.pipeline_mode<synchronous>, transform_indices = @transform_6, window_bounds = array<i64: 1, 128>}, {transform_indices = @transform_7, window_bounds = array<i64: 8, 128>}]} {
    %0 = tpu.iota {dimensions = array<i32: 1>} : vector<128x72xi32>
    %c0 = arith.constant 0 : index
    %c0_0 = arith.constant 0 : index
    %1 = vector.load %arg1[%c0, %c0_0] : memref<128x3xi32, #tpu.memory_space<vmem>>, vector<128x1xi32>
    %2 = vector.broadcast %1 : vector<128x1xi32> to vector<128x72xi32>
    %3 = arith.cmpi eq, %0, %2 : vector<128x72xi32>
    %c0_1 = arith.constant 0 : index
    %c1 = arith.constant 1 : index
    %4 = vector.load %arg1[%c0_1, %c1] : memref<128x3xi32, #tpu.memory_space<vmem>>, vector<128x1xi32>
    %5 = vector.broadcast %4 : vector<128x1xi32> to vector<128x72xi32>
    %6 = arith.cmpi eq, %0, %5 : vector<128x72xi32>
    %7 = arith.ori %3, %6 : vector<128x72xi1>
    %c0_2 = arith.constant 0 : index
    %c2 = arith.constant 2 : index
    %8 = vector.load %arg1[%c0_2, %c2] : memref<128x3xi32, #tpu.memory_space<vmem>>, vector<128x1xi32>
    %9 = vector.broadcast %8 : vector<128x1xi32> to vector<128x72xi32>
    %10 = arith.cmpi eq, %0, %9 : vector<128x72xi32>
    %11 = arith.ori %7, %10 : vector<128x72xi1>
    %12 = arith.extui %11 : vector<128x72xi1> to vector<128x72xi32>
    %13 = arith.sitofp %12 : vector<128x72xi32> to vector<128x72xf32>
    %14 = arith.truncf %13 : vector<128x72xf32> to vector<128x72xbf16>
    %c0_3 = arith.constant 0 : index
    %c0_4 = arith.constant 0 : index
    %15 = vector.load %arg2[%c0_3, %c0_4] : memref<72x64xbf16, #tpu.memory_space<vmem>>, vector<72x64xbf16>
    %cst = arith.constant dense<0.000000e+00> : vector<128x64xf32>
    %16 = tpu.matmul %14, %15, %cst {dimension_numbers = #tpu.dot_dimension_numbers<[1], [0], [0], [1], [0, 0, 1, 1], [], []>} : vector<128x72xbf16>, vector<72x64xbf16>, vector<128x64xf32> -> vector<128x64xf32>
    %17 = vector.shape_cast %16 : vector<128x64xf32> to vector<8x16x64xf32>
    %18 = tpu.iota {dimensions = array<i32: 1>} : vector<8x16x64xi32>
    %c14_i32 = arith.constant 14 : i32
    %19 = vector.broadcast %c14_i32 : i32 to vector<8x16x64xi32>
    %20 = arith.cmpi slt, %18, %19 : vector<8x16x64xi32>
    %cst_5 = arith.constant 0xFF800000 : f32
    %21 = vector.broadcast %cst_5 : f32 to vector<8x16x64xf32>
    %22 = arith.select %20, %17, %21 : vector<8x16x64xi1>, vector<8x16x64xf32>
    %cst_6 = arith.constant dense<0xFF800000> : vector<8x64xf32>
    %23 = vector.multi_reduction <maximumf>, %22, %cst_6 [1] : vector<8x16x64xf32> to vector<8x64xf32>
    %c0_7 = arith.constant 0 : index
    %c0_8 = arith.constant 0 : index
    %24 = vector.load %arg3[%c0_7, %c0_8] : memref<1x64xf32, #tpu.memory_space<vmem>>, vector<1x64xf32>
    %25 = vector.broadcast %24 : vector<1x64xf32> to vector<8x64xf32>
    %26 = arith.addf %23, %25 : vector<8x64xf32>
    %cst_9 = arith.constant 0.000000e+00 : f32
    %27 = vector.broadcast %cst_9 : f32 to vector<8x64xf32>
    %28 = arith.maximumf %26, %27 : vector<8x64xf32>
    %29 = arith.truncf %28 : vector<8x64xf32> to vector<8x64xbf16>
    %c0_10 = arith.constant 0 : index
    %c0_11 = arith.constant 0 : index
    %30 = vector.load %arg4[%c0_10, %c0_11] : memref<64x128xbf16, #tpu.memory_space<vmem>>, vector<64x128xbf16>
    %cst_12 = arith.constant dense<0.000000e+00> : vector<8x128xf32>
    %31 = tpu.matmul %29, %30, %cst_12 {dimension_numbers = #tpu.dot_dimension_numbers<[1], [0], [0], [1], [0, 0, 1, 1], [], []>} : vector<8x64xbf16>, vector<64x128xbf16>, vector<8x128xf32> -> vector<8x128xf32>
    %c0_13 = arith.constant 0 : index
    %c0_14 = arith.constant 0 : index
    %32 = vector.load %arg5[%c0_13, %c0_14] : memref<1x128xf32, #tpu.memory_space<vmem>>, vector<1x128xf32>
    %33 = vector.broadcast %32 : vector<1x128xf32> to vector<8x128xf32>
    %34 = arith.addf %31, %33 : vector<8x128xf32>
    %cst_15 = arith.constant 0.000000e+00 : f32
    %35 = vector.broadcast %cst_15 : f32 to vector<8x128xf32>
    %36 = arith.maximumf %34, %35 : vector<8x128xf32>
    %37 = arith.truncf %36 : vector<8x128xf32> to vector<8x128xbf16>
    %c0_16 = arith.constant 0 : index
    %c0_17 = arith.constant 0 : index
    %38 = vector.load %arg6[%c0_16, %c0_17] : memref<128x128xbf16, #tpu.memory_space<vmem>>, vector<128x128xbf16>
    %cst_18 = arith.constant dense<0.000000e+00> : vector<8x128xf32>
    %39 = tpu.matmul %37, %38, %cst_18 {dimension_numbers = #tpu.dot_dimension_numbers<[1], [0], [0], [1], [0, 0, 1, 1], [], []>} : vector<8x128xbf16>, vector<128x128xbf16>, vector<8x128xf32> -> vector<8x128xf32>
    %c0_19 = arith.constant 0 : index
    %c0_20 = arith.constant 0 : index
    %40 = vector.load %arg7[%c0_19, %c0_20] : memref<1x128xf32, #tpu.memory_space<vmem>>, vector<1x128xf32>
    %41 = vector.broadcast %40 : vector<1x128xf32> to vector<8x128xf32>
    %42 = arith.addf %39, %41 : vector<8x128xf32>
    %c0_21 = arith.constant 0 : index
    %c0_22 = arith.constant 0 : index
    %43 = vector.load %arg8[%c0_21, %c0_22] : memref<8x128xf32, #tpu.memory_space<vmem>>, vector<8x128xf32>
    tpu.vector_store %arg8[%c0_21, %c0_22], %42 {strides = array<i32>} : memref<8x128xf32, #tpu.memory_space<vmem>>, vector<8x128xf32>,
    return
  }
  func.func @transform_0(%arg0: i32) -> (i32, i32) {
    %c0_i32 = arith.constant 0 : i32
    %c0_i32_0 = arith.constant 0 : i32
    return %arg0, %c0_i32 : i32, i32
  }
  func.func @transform_1(%arg0: i32) -> (i32, i32) {
    %c0_i32 = arith.constant 0 : i32
    %c0_i32_0 = arith.constant 0 : i32
    %c0_i32_1 = arith.constant 0 : i32
    return %c0_i32, %c0_i32_0 : i32, i32
  }
  func.func @transform_2(%arg0: i32) -> (i32, i32) {
    %c0_i32 = arith.constant 0 : i32
    %c0_i32_0 = arith.constant 0 : i32
    %c0_i32_1 = arith.constant 0 : i32
    return %c0_i32, %c0_i32_0 : i32, i32
  }
  func.func @transform_3(%arg0: i32) -> (i32, i32) {
    %c0_i32 = arith.constant 0 : i32
    %c0_i32_0 = arith.constant 0 : i32
    %c0_i32_1 = arith.constant 0 : i32
    return %c0_i32, %c0_i32_0 : i32, i32
  }
  func.func @transform_4(%arg0: i32) -> (i32, i32) {
    %c0_i32 = arith.constant 0 : i32
    %c0_i32_0 = arith.constant 0 : i32
    %c0_i32_1 = arith.constant 0 : i32
    return %c0_i32, %c0_i32_0 : i32, i32
  }
  func.func @transform_5(%arg0: i32) -> (i32, i32) {
    %c0_i32 = arith.constant 0 : i32
    %c0_i32_0 = arith.constant 0 : i32
    %c0_i32_1 = arith.constant 0 : i32
    return %c0_i32, %c0_i32_0 : i32, i32
  }
  func.func @transform_6(%arg0: i32) -> (i32, i32) {
    %c0_i32 = arith.constant 0 : i32
    %c0_i32_0 = arith.constant 0 : i32
    %c0_i32_1 = arith.constant 0 : i32
    return %c0_i32, %c0_i32_0 : i32, i32
  }
  func.func @transform_7(%arg0: i32) -> (i32, i32) {
    %c0_i32 = arith.constant 0 : i32
    %c0_i32_0 = arith.constant 0 : i32
    return %arg0, %c0_i32 : i32, i32
  }
}

</mosaic_0001>

<llo_original>
// kernel: tpu_custom_call.1
$region0: #{tpu_custom_call.1}
  #allocation0 [shape = 'u32[]', space=smem, size = 0x4, offset = 0x4, fixed_abs, tag = 'smem constant byte address 0x4 - core index']
  #allocation1 [shape = 'u32[144,128]{1,0:T(1,128)}', space=vmem, size = 0x12000, scoped, tag = 'internal scratch']
  %s0 = inlined_call_operand.vmem [shape: s32[128,3], index: 0, kind: input, shape index: {}]
  %s1 = inlined_call_operand.vmem [shape: bf16[72,64], index: 1, kind: input, shape index: {}]
  %s2 = inlined_call_operand.vmem [shape: f32[1,64], index: 2, kind: input, shape index: {}]
  %s3 = inlined_call_operand.vmem [shape: bf16[64,128], index: 3, kind: input, shape index: {}]
  %s4 = inlined_call_operand.vmem [shape: f32[1,128], index: 4, kind: input, shape index: {}]
  %s5 = inlined_call_operand.vmem [shape: bf16[128,128], index: 5, kind: input, shape index: {}]
  %s6 = inlined_call_operand.vmem [shape: f32[1,128], index: 6, kind: input, shape index: {}]
  %s7 = inlined_call_operand.hbm [shape: f32[8,128], index: 7, kind: output, shape index: {}]
  %s8 = sld [smem:[#allocation0]]
  $region38: #{tpu_custom_call.1} parent=0
    _
  %s10 = ssub.s32 1, %s8
  %s11 = scalar_select 0, %s10, %s8
  $region1: #{tpu_custom_call.1} parent=0
    #allocation2 [shape = 'u8[4096]{0}', space=vmem, size = 0x1000, scoped, tag = 'output window, operand 0, single buffered']
    #allocation3 [shape = 's32[1]{0}', space=sflag, size = 0x4, scoped, tag = 'scoped memory for tpu_custom_call.1']
    %12 = vsyncpa [#allocation3], 0
    // Predicated region
    $region2: #{tpu_custom_call.1} parent=1 // pred_check
      _
    $region3: #{tpu_custom_call.1} parent=1 // pred_check_branch
      %14 = sbr.rel (0) target = $region5
    $region4: #{tpu_custom_call.1} parent=1 // pred_region
      _
    $region5: #{tpu_custom_call.1} parent=1 // pred_fallthru
      _
    // Predicated region
    $region6: #{tpu_custom_call.1} parent=1 // pred_check
      _
    $region7: #{tpu_custom_call.1} parent=1 // pred_check_branch
      %16 = sbr.rel (0) target = $region9
    $region8: #{tpu_custom_call.1} parent=1 // pred_region
      _
    $region9: #{tpu_custom_call.1} parent=1 // pred_fallthru
      _
    // Predicated region
    $region10: #{tpu_custom_call.1} parent=1 // pred_check
      _
    $region11: #{tpu_custom_call.1} parent=1 // pred_check_branch
      %18 = sbr.rel (0) target = $region13
    $region12: #{tpu_custom_call.1} parent=1 // pred_region
      _
    $region13: #{tpu_custom_call.1} parent=1 // pred_fallthru
      _
    // Predicated region
    $region14: #{tpu_custom_call.1} parent=1 // pred_check
      _
    $region15: #{tpu_custom_call.1} parent=1 // pred_check_branch
      %20 = sbr.rel (0) target = $region17
    $region16: #{tpu_custom_call.1} parent=1 // pred_region
      _
    $region17: #{tpu_custom_call.1} parent=1 // pred_fallthru
      _
    // Predicated region
    $region18: #{tpu_custom_call.1} parent=1 // pred_check
      _
    $region19: #{tpu_custom_call.1} parent=1 // pred_check_branch
      %22 = sbr.rel (0) target = $region21
    $region20: #{tpu_custom_call.1} parent=1 // pred_region
      _
    $region21: #{tpu_custom_call.1} parent=1 // pred_fallthru
      _
    // Predicated region
    $region22: #{tpu_custom_call.1} parent=1 // pred_check
      _
    $region23: #{tpu_custom_call.1} parent=1 // pred_check_branch
      %24 = sbr.rel (0) target = $region25
    $region24: #{tpu_custom_call.1} parent=1 // pred_region
      _
    $region25: #{tpu_custom_call.1} parent=1 // pred_fallthru
      _
    // Predicated region
    $region26: #{tpu_custom_call.1} parent=1 // pred_check
      _
    $region27: #{tpu_custom_call.1} parent=1 // pred_check_branch
      %26 = sbr.rel (0) target = $region29
    $region28: #{tpu_custom_call.1} parent=1 // pred_region
      _
    $region29: #{tpu_custom_call.1} parent=1 // pred_fallthru
      _
    %v28 = vlaneseq
    %v29 = vand.u32 %v28, 127
    %v30 = vld [vmem:[%s0] sm:$0xff]
    %v31 = vld [vmem:[%s0 + $0x8] sm:$0xff]
    %v32 = vld [vmem:[%s0 + $0x10] sm:$0xff]
    %v33 = vld [vmem:[%s0 + $0x18] sm:$0xff]
    %v34 = vld [vmem:[%s0 + $0x20] sm:$0xff]
    %v35 = vld [vmem:[%s0 + $0x28] sm:$0xff]
    %v36 = vld [vmem:[%s0 + $0x30] sm:$0xff]
    %v37 = vld [vmem:[%s0 + $0x38] sm:$0xff]
    %v38 = vld [vmem:[%s0 + $0x40] sm:$0xff]
    %v39 = vld [vmem:[%s0 + $0x48] sm:$0xff]
    %v40 = vld [vmem:[%s0 + $0x50] sm:$0xff]
    %v41 = vld [vmem:[%s0 + $0x58] sm:$0xff]
    %v42 = vld [vmem:[%s0 + $0x60] sm:$0xff]
    %v43 = vld [vmem:[%s0 + $0x68] sm:$0xff]
    %v44 = vld [vmem:[%s0 + $0x70] sm:$0xff]
    %v45 = vld [vmem:[%s0 + $0x78] sm:$0xff]
    %46 = vset.pattern.permute.xlu0 0
    %47 = vperm.xlu0 %46, %v30
    %v48 = vpop.permute.xlu0 %47
    %49 = vset.pattern.permute.xlu0 0
    %50 = vperm.xlu0 %49, %v31
    %v51 = vpop.permute.xlu0 %50
    %52 = vset.pattern.permute.xlu0 0
    %53 = vperm.xlu0 %52, %v32
    %v54 = vpop.permute.xlu0 %53
    %55 = vset.pattern.permute.xlu0 0
    %56 = vperm.xlu0 %55, %v33
    %v57 = vpop.permute.xlu0 %56
    %58 = vset.pattern.permute.xlu0 0
    %59 = vperm.xlu0 %58, %v34
    %v60 = vpop.permute.xlu0 %59
    %61 = vset.pattern.permute.xlu0 0
    %62 = vperm.xlu0 %61, %v35
    %v63 = vpop.permute.xlu0 %62
    %64 = vset.pattern.permute.xlu0 0
    %65 = vperm.xlu0 %64, %v36
    %v66 = vpop.permute.xlu0 %65
    %67 = vset.pattern.permute.xlu0 0
    %68 = vperm.xlu0 %67, %v37
    %v69 = vpop.permute.xlu0 %68
    %70 = vset.pattern.permute.xlu0 0
    %71 = vperm.xlu0 %70, %v38
    %v72 = vpop.permute.xlu0 %71
    %73 = vset.pattern.permute.xlu0 0
    %74 = vperm.xlu0 %73, %v39
    %v75 = vpop.permute.xlu0 %74
    %76 = vset.pattern.permute.xlu0 0
    %77 = vperm.xlu0 %76, %v40
    %v78 = vpop.permute.xlu0 %77
    %79 = vset.pattern.permute.xlu0 0
    %80 = vperm.xlu0 %79, %v41
    %v81 = vpop.permute.xlu0 %80
    %82 = vset.pattern.permute.xlu0 0
    %83 = vperm.xlu0 %82, %v42
    %v84 = vpop.permute.xlu0 %83
    %85 = vset.pattern.permute.xlu0 0
    %86 = vperm.xlu0 %85, %v43
    %v87 = vpop.permute.xlu0 %86
    %88 = vset.pattern.permute.xlu0 0
    %89 = vperm.xlu0 %88, %v44
    %v90 = vpop.permute.xlu0 %89
    %91 = vset.pattern.permute.xlu0 0
    %92 = vperm.xlu0 %91, %v45
    %v93 = vpop.permute.xlu0 %92
    %vm94 = vcmp.eq.s32.totalorder %v29, %v48
    %vm95 = vcmp.eq.s32.totalorder %v29, %v51
    %vm96 = vcmp.eq.s32.totalorder %v29, %v54
    %vm97 = vcmp.eq.s32.totalorder %v29, %v57
    %vm98 = vcmp.eq.s32.totalorder %v29, %v60
    %vm99 = vcmp.eq.s32.totalorder %v29, %v63
    %vm100 = vcmp.eq.s32.totalorder %v29, %v66
    %vm101 = vcmp.eq.s32.totalorder %v29, %v69
    %vm102 = vcmp.eq.s32.totalorder %v29, %v72
    %vm103 = vcmp.eq.s32.totalorder %v29, %v75
    %vm104 = vcmp.eq.s32.totalorder %v29, %v78
    %vm105 = vcmp.eq.s32.totalorder %v29, %v81
    %vm106 = vcmp.eq.s32.totalorder %v29, %v84
    %vm107 = vcmp.eq.s32.totalorder %v29, %v87
    %vm108 = vcmp.eq.s32.totalorder %v29, %v90
    %vm109 = vcmp.eq.s32.totalorder %v29, %v93
    %110 = vset.pattern.permute.xlu0 1
    %111 = vperm.xlu0 %110, %v30
    %v112 = vpop.permute.xlu0 %111
    %113 = vset.pattern.permute.xlu0 1
    %114 = vperm.xlu0 %113, %v31
    %v115 = vpop.permute.xlu0 %114
    %116 = vset.pattern.permute.xlu0 1
    %117 = vperm.xlu0 %116, %v32
    %v118 = vpop.permute.xlu0 %117
    %119 = vset.pattern.permute.xlu0 1
    %120 = vperm.xlu0 %119, %v33
    %v121 = vpop.permute.xlu0 %120
    %122 = vset.pattern.permute.xlu0 1
    %123 = vperm.xlu0 %122, %v34
    %v124 = vpop.permute.xlu0 %123
    %125 = vset.pattern.permute.xlu0 1
    %126 = vperm.xlu0 %125, %v35
    %v127 = vpop.permute.xlu0 %126
    %128 = vset.pattern.permute.xlu0 1
    %129 = vperm.xlu0 %128, %v36
    %v130 = vpop.permute.xlu0 %129
    %131 = vset.pattern.permute.xlu0 1
    %132 = vperm.xlu0 %131, %v37
    %v133 = vpop.permute.xlu0 %132
    %134 = vset.pattern.permute.xlu0 1
    %135 = vperm.xlu0 %134, %v38
    %v136 = vpop.permute.xlu0 %135
    %137 = vset.pattern.permute.xlu0 1
    %138 = vperm.xlu0 %137, %v39
    %v139 = vpop.permute.xlu0 %138
    %140 = vset.pattern.permute.xlu0 1
    %141 = vperm.xlu0 %140, %v40
    %v142 = vpop.permute.xlu0 %141
    %143 = vset.pattern.permute.xlu0 1
    %144 = vperm.xlu0 %143, %v41
    %v145 = vpop.permute.xlu0 %144
    %146 = vset.pattern.permute.xlu0 1
    %147 = vperm.xlu0 %146, %v42
    %v148 = vpop.permute.xlu0 %147
    %149 = vset.pattern.permute.xlu0 1
    %150 = vperm.xlu0 %149, %v43
    %v151 = vpop.permute.xlu0 %150
    %152 = vset.pattern.permute.xlu0 1
    %153 = vperm.xlu0 %152, %v44
    %v154 = vpop.permute.xlu0 %153
    %155 = vset.pattern.permute.xlu0 1
    %156 = vperm.xlu0 %155, %v45
    %v157 = vpop.permute.xlu0 %156
    %vm158 = vcmp.eq.s32.totalorder %v29, %v112
    %vm159 = vcmp.eq.s32.totalorder %v29, %v115
    %vm160 = vcmp.eq.s32.totalorder %v29, %v118
    %vm161 = vcmp.eq.s32.totalorder %v29, %v121
    %vm162 = vcmp.eq.s32.totalorder %v29, %v124
    %vm163 = vcmp.eq.s32.totalorder %v29, %v127
    %vm164 = vcmp.eq.s32.totalorder %v29, %v130
    %vm165 = vcmp.eq.s32.totalorder %v29, %v133
    %vm166 = vcmp.eq.s32.totalorder %v29, %v136
    %vm167 = vcmp.eq.s32.totalorder %v29, %v139
    %vm168 = vcmp.eq.s32.totalorder %v29, %v142
    %vm169 = vcmp.eq.s32.totalorder %v29, %v145
    %vm170 = vcmp.eq.s32.totalorder %v29, %v148
    %vm171 = vcmp.eq.s32.totalorder %v29, %v151
    %vm172 = vcmp.eq.s32.totalorder %v29, %v154
    %vm173 = vcmp.eq.s32.totalorder %v29, %v157
    %vm174 = vmor %vm94, %vm158
    %vm175 = vmor %vm95, %vm159
    %vm176 = vmor %vm96, %vm160
    %vm177 = vmor %vm97, %vm161
    %vm178 = vmor %vm98, %vm162
    %vm179 = vmor %vm99, %vm163
    %vm180 = vmor %vm100, %vm164
    %vm181 = vmor %vm101, %vm165
    %vm182 = vmor %vm102, %vm166
    %vm183 = vmor %vm103, %vm167
    %vm184 = vmor %vm104, %vm168
    %vm185 = vmor %vm105, %vm169
    %vm186 = vmor %vm106, %vm170
    %vm187 = vmor %vm107, %vm171
    %vm188 = vmor %vm108, %vm172
    %vm189 = vmor %vm109, %vm173
    %190 = vset.pattern.permute.xlu0 2
    %191 = vperm.xlu0 %190, %v30
    %v192 = vpop.permute.xlu0 %191
    %193 = vset.pattern.permute.xlu0 2
    %194 = vperm.xlu0 %193, %v31
    %v195 = vpop.permute.xlu0 %194
    %196 = vset.pattern.permute.xlu0 2
    %197 = vperm.xlu0 %196, %v32
    %v198 = vpop.permute.xlu0 %197
    %199 = vset.pattern.permute.xlu0 2
    %200 = vperm.xlu0 %199, %v33
    %v201 = vpop.permute.xlu0 %200
    %202 = vset.pattern.permute.xlu0 2
    %203 = vperm.xlu0 %202, %v34
    %v204 = vpop.permute.xlu0 %203
    %205 = vset.pattern.permute.xlu0 2
    %206 = vperm.xlu0 %205, %v35
    %v207 = vpop.permute.xlu0 %206
    %208 = vset.pattern.permute.xlu0 2
    %209 = vperm.xlu0 %208, %v36
    %v210 = vpop.permute.xlu0 %209
    %211 = vset.pattern.permute.xlu0 2
    %212 = vperm.xlu0 %211, %v37
    %v213 = vpop.permute.xlu0 %212
    %214 = vset.pattern.permute.xlu0 2
    %215 = vperm.xlu0 %214, %v38
    %v216 = vpop.permute.xlu0 %215
    %217 = vset.pattern.permute.xlu0 2
    %218 = vperm.xlu0 %217, %v39
    %v219 = vpop.permute.xlu0 %218
    %220 = vset.pattern.permute.xlu0 2
    %221 = vperm.xlu0 %220, %v40
    %v222 = vpop.permute.xlu0 %221
    %223 = vset.pattern.permute.xlu0 2
    %224 = vperm.xlu0 %223, %v41
    %v225 = vpop.permute.xlu0 %224
    %226 = vset.pattern.permute.xlu0 2
    %227 = vperm.xlu0 %226, %v42
    %v228 = vpop.permute.xlu0 %227
    %229 = vset.pattern.permute.xlu0 2
    %230 = vperm.xlu0 %229, %v43
    %v231 = vpop.permute.xlu0 %230
    %232 = vset.pattern.permute.xlu0 2
    %233 = vperm.xlu0 %232, %v44
    %v234 = vpop.permute.xlu0 %233
    %235 = vset.pattern.permute.xlu0 2
    %236 = vperm.xlu0 %235, %v45
    %v237 = vpop.permute.xlu0 %236
    %vm238 = vcmp.eq.s32.totalorder %v29, %v192
    %vm239 = vcmp.eq.s32.totalorder %v29, %v195
    %vm240 = vcmp.eq.s32.totalorder %v29, %v198
    %vm241 = vcmp.eq.s32.totalorder %v29, %v201
    %vm242 = vcmp.eq.s32.totalorder %v29, %v204
    %vm243 = vcmp.eq.s32.totalorder %v29, %v207
    %vm244 = vcmp.eq.s32.totalorder %v29, %v210
    %vm245 = vcmp.eq.s32.totalorder %v29, %v213
    %vm246 = vcmp.eq.s32.totalorder %v29, %v216
    %vm247 = vcmp.eq.s32.totalorder %v29, %v219
    %vm248 = vcmp.eq.s32.totalorder %v29, %v222
    %vm249 = vcmp.eq.s32.totalorder %v29, %v225
    %vm250 = vcmp.eq.s32.totalorder %v29, %v228
    %vm251 = vcmp.eq.s32.totalorder %v29, %v231
    %vm252 = vcmp.eq.s32.totalorder %v29, %v234
    %vm253 = vcmp.eq.s32.totalorder %v29, %v237
    %vm254 = vmor %vm174, %vm238
    %vm255 = vmor %vm175, %vm239
    %vm256 = vmor %vm176, %vm240
    %vm257 = vmor %vm177, %vm241
    %vm258 = vmor %vm178, %vm242
    %vm259 = vmor %vm179, %vm243
    %vm260 = vmor %vm180, %vm244
    %vm261 = vmor %vm181, %vm245
    %vm262 = vmor %vm182, %vm246
    %vm263 = vmor %vm183, %vm247
    %vm264 = vmor %vm184, %vm248
    %vm265 = vmor %vm185, %vm249
    %vm266 = vmor %vm186, %vm250
    %vm267 = vmor %vm187, %vm251
    %vm268 = vmor %vm188, %vm252
    %vm269 = vmor %vm189, %vm253
    %v270 = vsel %vm254, 1, 0
    %v271 = vsel %vm255, 1, 0
    %v272 = vsel %vm256, 1, 0
    %v273 = vsel %vm257, 1, 0
    %v274 = vsel %vm258, 1, 0
    %v275 = vsel %vm259, 1, 0
    %v276 = vsel %vm260, 1, 0
    %v277 = vsel %vm261, 1, 0
    %v278 = vsel %vm262, 1, 0
    %v279 = vsel %vm263, 1, 0
    %v280 = vsel %vm264, 1, 0
    %v281 = vsel %vm265, 1, 0
    %v282 = vsel %vm266, 1, 0
    %v283 = vsel %vm267, 1, 0
    %v284 = vsel %vm268, 1, 0
    %v285 = vsel %vm269, 1, 0
    %v286 = vcvt.s32.f32 %v270
    %v287 = vcvt.s32.f32 %v271
    %v288 = vcvt.s32.f32 %v272
    %v289 = vcvt.s32.f32 %v273
    %v290 = vcvt.s32.f32 %v274
    %v291 = vcvt.s32.f32 %v275
    %v292 = vcvt.s32.f32 %v276
    %v293 = vcvt.s32.f32 %v277
    %v294 = vcvt.s32.f32 %v278
    %v295 = vcvt.s32.f32 %v279
    %v296 = vcvt.s32.f32 %v280
    %v297 = vcvt.s32.f32 %v281
    %v298 = vcvt.s32.f32 %v282
    %v299 = vcvt.s32.f32 %v283
    %v300 = vcvt.s32.f32 %v284
    %v301 = vcvt.s32.f32 %v285
    %v302 = vpack.c.bf16 %v287, %v286
    %v303 = vpack.c.bf16 %v289, %v288
    %v304 = vpack.c.bf16 %v291, %v290
    %v305 = vpack.c.bf16 %v293, %v292
    %v306 = vpack.c.bf16 %v295, %v294
    %v307 = vpack.c.bf16 %v297, %v296
    %v308 = vpack.c.bf16 %v299, %v298
    %v309 = vpack.c.bf16 %v301, %v300
    %v310 = vld [vmem:[%s1] sm:$0xf]
    %v311 = vld [vmem:[%s1 + $0x4] sm:$0xf]
    %v312 = vld [vmem:[%s1 + $0x8] sm:$0xf]
    %v313 = vld [vmem:[%s1 + $0xc] sm:$0xf]
    %v314 = vld [vmem:[%s1 + $0x10] sm:$0xf]
    %v315 = vld [vmem:[%s1 + $0x14] sm:$0xf]
    %v316 = vld [vmem:[%s1 + $0x18] sm:$0xf]
    %v317 = vld [vmem:[%s1 + $0x1c] sm:$0xf]
    %v318 = vld [vmem:[%s1 + $0x20] sm:$0xf]
    %v328 = vunpack.c.l.b16 %v310
    %v329 = vunpack.c.l.b16 %v311
    %v330 = vunpack.c.l.b16 %v312
    %v331 = vunpack.c.l.b16 %v313
    %v332 = vunpack.c.l.b16 %v314
    %v333 = vunpack.c.l.b16 %v315
    %v334 = vunpack.c.l.b16 %v316
    %v335 = vunpack.c.l.b16 %v317
    %v336 = vunpack.c.l.b16 %v318
    %v337 = vpack.c.b16 %v329, %v328
    %v338 = vpack.c.b16 %v331, %v330
    %v339 = vpack.c.b16 %v333, %v332
    %v340 = vpack.c.b16 %v335, %v334
    %v341 = vpack.c.b16 %v336, %v336
    %vm346 = vcmask 588800
    %v348 = vsel %vm346, %v302, 0
    %v351 = vsel %vm346, %v303, 0
    %v354 = vsel %vm346, %v304, 0
    %v357 = vsel %vm346, %v305, 0
    %v360 = vsel %vm346, %v306, 0
    %v363 = vsel %vm346, %v307, 0
    %v366 = vsel %vm346, %v308, 0
    %v369 = vsel %vm346, %v309, 0
    %vm371 = vcmask 1043456
    %v373 = vsel %vm371, %v341, 0
    %375 = vmatprep.subr.bf16.mxu0 0
    %376 = vmatpush1.bf16.msra.mxu0 %v337
    %377 = vmatprep.subr.bf16.mxu0 0
    %378 = vmatpush1.bf16.msra.mxu0 %v338
    %379 = vmatprep.subr.bf16.mxu0 0
    %380 = vmatpush1.bf16.msra.mxu0 %v339
    %381 = vmatprep.subr.bf16.mxu0 0
    %382 = vmatpush1.bf16.msra.mxu0 %v340
    %383 = vmatprep.subr.bf16.mxu0 0
    %384 = vmatpush1.bf16.msra.mxu0 %v373
    %385 = vmatprep.subr.bf16.mxu0 0
    %386 = vmatpush1.bf16.msra.mxu0 0
    %387 = vmatprep.subr.bf16.mxu0 0
    %388 = vmatpush1.bf16.msra.mxu0 0
    %389 = vmatprep.subr.bf16.mxu0 0
    %390 = vmatpush1.bf16.msra.mxu0 0
    %391 = vmatprep.subr.bf16.mxu0 0
    %392 = vmatpush1.bf16.msra.mxu0 0
    %393 = vmatprep.subr.bf16.mxu0 0
    %394 = vmatpush1.bf16.msra.mxu0 0
    %395 = vmatprep.subr.bf16.mxu0 0
    %396 = vmatpush1.bf16.msra.mxu0 0
    %397 = vmatprep.subr.bf16.mxu0 0
    %398 = vmatpush1.bf16.msra.mxu0 0
    %399 = vmatprep.subr.bf16.mxu0 0
    %400 = vmatpush1.bf16.msra.mxu0 0
    %401 = vmatprep.subr.bf16.mxu0 0
    %402 = vmatpush1.bf16.msra.mxu0 0
    %403 = vmatprep.subr.bf16.mxu0 0
    %404 = vmatpush1.bf16.msra.mxu0 0
    %405 = vmatprep.subr.bf16.mxu0 0
    %406 = vmatpush1.bf16.msra.mxu0 0
    %407 = vmatprep.mubr.bf16.mxu0 0
    %408 = vmatmul.mubr.bf16.gmra.mrb[0].mxu0 %v348
    %v409 = vpop.f32.mrb[0].mxu0
    %v410 = vadd.f32 0.0, %v409
    %v411 = vpop.f32.mrb[0].mxu0
    %v412 = vpop.f32.mrb[0].mxu0
    %v413 = vadd.f32 0.0, %v412
    %v414 = vpop.f32.mrb[0].mxu0
    %415 = vmatprep.mubr.bf16.mxu0 0
    %416 = vmatmul.mubr.bf16.gmra.mrb[0].mxu0 %v351
    %v417 = vpop.f32.mrb[0].mxu0
    %v418 = vadd.f32 0.0, %v417
    %v419 = vpop.f32.mrb[0].mxu0
    %v420 = vpop.f32.mrb[0].mxu0
    %v421 = vadd.f32 0.0, %v420
    %v422 = vpop.f32.mrb[0].mxu0
    %423 = vmatprep.mubr.bf16.mxu0 0
    %424 = vmatmul.mubr.bf16.gmra.mrb[0].mxu0 %v354
    %v425 = vpop.f32.mrb[0].mxu0
    %v426 = vadd.f32 0.0, %v425
    %v427 = vpop.f32.mrb[0].mxu0
    %v428 = vpop.f32.mrb[0].mxu0
    %v429 = vadd.f32 0.0, %v428
    %v430 = vpop.f32.mrb[0].mxu0
    %431 = vmatprep.mubr.bf16.mxu0 0
    %432 = vmatmul.mubr.bf16.gmra.mrb[0].mxu0 %v357
    %v433 = vpop.f32.mrb[0].mxu0
    %v434 = vadd.f32 0.0, %v433
    %v435 = vpop.f32.mrb[0].mxu0
    %v436 = vpop.f32.mrb[0].mxu0
    %v437 = vadd.f32 0.0, %v436
    %v438 = vpop.f32.mrb[0].mxu0
    %439 = vmatprep.mubr.bf16.mxu0 0
    %440 = vmatmul.mubr.bf16.gmra.mrb[0].mxu0 %v360
    %v441 = vpop.f32.mrb[0].mxu0
    %v442 = vadd.f32 0.0, %v441
    %v443 = vpop.f32.mrb[0].mxu0
    %v444 = vpop.f32.mrb[0].mxu0
    %v445 = vadd.f32 0.0, %v444
    %v446 = vpop.f32.mrb[0].mxu0
    %447 = vmatprep.mubr.bf16.mxu0 0
    %448 = vmatmul.mubr.bf16.gmra.mrb[0].mxu0 %v363
    %v449 = vpop.f32.mrb[0].mxu0
    %v450 = vadd.f32 0.0, %v449
    %v451 = vpop.f32.mrb[0].mxu0
    %v452 = vpop.f32.mrb[0].mxu0
    %v453 = vadd.f32 0.0, %v452
    %v454 = vpop.f32.mrb[0].mxu0
    %455 = vmatprep.mubr.bf16.mxu0 0
    %456 = vmatmul.mubr.bf16.gmra.mrb[0].mxu0 %v366
    %v457 = vpop.f32.mrb[0].mxu0
    %v458 = vadd.f32 0.0, %v457
    %v459 = vpop.f32.mrb[0].mxu0
    %v460 = vpop.f32.mrb[0].mxu0
    %v461 = vadd.f32 0.0, %v460
    %v462 = vpop.f32.mrb[0].mxu0
    %463 = vmatprep.mubr.bf16.mxu0 0
    %464 = vmatmul.mubr.bf16.gmra.mrb[0].mxu0 %v369
    %v465 = vpop.f32.mrb[0].mxu0
    %v466 = vadd.f32 0.0, %v465
    %v467 = vpop.f32.mrb[0].mxu0
    %v468 = vpop.f32.mrb[0].mxu0
    %v469 = vadd.f32 0.0, %v468
    %v470 = vpop.f32.mrb[0].mxu0
    %471 = vdwg.mxu0
    %v472 = vlaneseq
    %v473 = vshrl.u32 %v472, 7
    %v474 = vadd.s32 %v473, 8
    %vm475 = vcmp.lt.s32.totalorder %v473, 14
    %vm476 = vcmp.lt.s32.totalorder %v474, 14
    %v477 = vsel %vm475, %v410, -inf
    %v478 = vsel %vm476, %v413, -inf
    %v479 = vsel %vm475, %v418, -inf
    %v480 = vsel %vm476, %v421, -inf
    %v481 = vsel %vm475, %v426, -inf
    %v482 = vsel %vm476, %v429, -inf
    %v483 = vsel %vm475, %v434, -inf
    %v484 = vsel %vm476, %v437, -inf
    %v485 = vsel %vm475, %v442, -inf
    %v486 = vsel %vm476, %v445, -inf
    %v487 = vsel %vm475, %v450, -inf
    %v488 = vsel %vm476, %v453, -inf
    %v489 = vsel %vm475, %v458, -inf
    %v490 = vsel %vm476, %v461, -inf
    %v491 = vsel %vm475, %v466, -inf
    %v492 = vsel %vm476, %v469, -inf
    %vm493 = vcmask 523264
    %v494 = vsel %vm493, %v477, -inf
    %v495 = vsel %vm493, %v478, -inf
    %v496 = vmax.f32 %v494, %v495
    %v497 = vrot.slane %v496, 4
    %v498 = vmax.f32 %v496, %v497
    %v499 = vrot.slane %v498, 2
    %v500 = vmax.f32 %v498, %v499
    %v501 = vrot.slane %v500, 1
    %v502 = vmax.f32 %v500, %v501
    %v503 = vsel %vm493, %v479, -inf
    %v504 = vsel %vm493, %v480, -inf
    %v505 = vmax.f32 %v503, %v504
    %v506 = vrot.slane %v505, 4
    %v507 = vmax.f32 %v505, %v506
    %v508 = vrot.slane %v507, 2
    %v509 = vmax.f32 %v507, %v508
    %v510 = vrot.slane %v509, 1
    %v511 = vmax.f32 %v509, %v510
    %v512 = vsel %vm493, %v481, -inf
    %v513 = vsel %vm493, %v482, -inf
    %v514 = vmax.f32 %v512, %v513
    %v515 = vrot.slane %v514, 4
    %v516 = vmax.f32 %v514, %v515
    %v517 = vrot.slane %v516, 2
    %v518 = vmax.f32 %v516, %v517
    %v519 = vrot.slane %v518, 1
    %v520 = vmax.f32 %v518, %v519
    %v521 = vsel %vm493, %v483, -inf
    %v522 = vsel %vm493, %v484, -inf
    %v523 = vmax.f32 %v521, %v522
    %v524 = vrot.slane %v523, 4
    %v525 = vmax.f32 %v523, %v524
    %v526 = vrot.slane %v525, 2
    %v527 = vmax.f32 %v525, %v526
    %v528 = vrot.slane %v527, 1
    %v529 = vmax.f32 %v527, %v528
    %v530 = vsel %vm493, %v485, -inf
    %v531 = vsel %vm493, %v486, -inf
    %v532 = vmax.f32 %v530, %v531
    %v533 = vrot.slane %v532, 4
    %v534 = vmax.f32 %v532, %v533
    %v535 = vrot.slane %v534, 2
    %v536 = vmax.f32 %v534, %v535
    %v537 = vrot.slane %v536, 1
    %v538 = vmax.f32 %v536, %v537
    %v539 = vsel %vm493, %v487, -inf
    %v540 = vsel %vm493, %v488, -inf
    %v541 = vmax.f32 %v539, %v540
    %v542 = vrot.slane %v541, 4
    %v543 = vmax.f32 %v541, %v542
    %v544 = vrot.slane %v543, 2
    %v545 = vmax.f32 %v543, %v544
    %v546 = vrot.slane %v545, 1
    %v547 = vmax.f32 %v545, %v546
    %v548 = vsel %vm493, %v489, -inf
    %v549 = vsel %vm493, %v490, -inf
    %v550 = vmax.f32 %v548, %v549
    %v551 = vrot.slane %v550, 4
    %v552 = vmax.f32 %v550, %v551
    %v553 = vrot.slane %v552, 2
    %v554 = vmax.f32 %v552, %v553
    %v555 = vrot.slane %v554, 1
    %v556 = vmax.f32 %v554, %v555
    %v557 = vsel %vm493, %v491, -inf
    %v558 = vsel %vm493, %v492, -inf
    %v559 = vmax.f32 %v557, %v558
    %v560 = vrot.slane %v559, 4
    %v561 = vmax.f32 %v559, %v560
    %v562 = vrot.slane %v561, 2
    %v563 = vmax.f32 %v561, %v562
    %v564 = vrot.slane %v563, 1
    %v565 = vmax.f32 %v563, %v564
    %v566 = vld [vmem:[%s2] sm:$0x1]
    %v568 = vlaneseq
    %v569 = vshrl.u32 %v568, 7
    %v570 = vsub.s32 0, %v569
    %v571 = vrot.slane %v566, %v570
    %v573 = vadd.f32 %v502, %v571
    %v574 = vadd.f32 %v511, %v571
    %v575 = vadd.f32 %v520, %v571
    %v576 = vadd.f32 %v529, %v571
    %v577 = vadd.f32 %v538, %v571
    %v578 = vadd.f32 %v547, %v571
    %v579 = vadd.f32 %v556, %v571
    %v580 = vadd.f32 %v565, %v571
    %v581 = vmax.f32 %v573, 0.0
    %v582 = vmax.f32 %v574, 0.0
    %v583 = vmax.f32 %v575, 0.0
    %v584 = vmax.f32 %v576, 0.0
    %v585 = vmax.f32 %v577, 0.0
    %v586 = vmax.f32 %v578, 0.0
    %v587 = vmax.f32 %v579, 0.0
    %v588 = vmax.f32 %v580, 0.0
    %v589 = vpack.c.bf16 %v581, %v581
    %v590 = vpack.c.bf16 %v582, %v582
    %v591 = vpack.c.bf16 %v583, %v583
    %v592 = vpack.c.bf16 %v584, %v584
    %v593 = vpack.c.bf16 %v585, %v585
    %v594 = vpack.c.bf16 %v586, %v586
    %v595 = vpack.c.bf16 %v587, %v587
    %v596 = vpack.c.bf16 %v588, %v588
    %v597 = vld [vmem:[%s3] sm:$0xf]
    %v598 = vld [vmem:[%s3 + $0x4] sm:$0xf]
    %v599 = vld [vmem:[%s3 + $0x8] sm:$0xf]
    %v600 = vld [vmem:[%s3 + $0xc] sm:$0xf]
    %v601 = vld [vmem:[%s3 + $0x10] sm:$0xf]
    %v602 = vld [vmem:[%s3 + $0x14] sm:$0xf]
    %v603 = vld [vmem:[%s3 + $0x18] sm:$0xf]
    %v604 = vld [vmem:[%s3 + $0x1c] sm:$0xf]
    %v605 = vld [vmem:[%s4] sm:$0x1]
    %v607 = vlaneseq
    %v608 = vshrl.u32 %v607, 7
    %v609 = vsub.s32 0, %v608
    %v610 = vrot.slane %v605, %v609
    %v620 = vunpack.c.l.b16 %v589
    %v621 = vunpack.c.l.b16 %v590
    %v622 = vunpack.c.l.b16 %v591
    %v623 = vunpack.c.l.b16 %v592
    %v624 = vunpack.c.l.b16 %v593
    %v625 = vunpack.c.l.b16 %v594
    %v626 = vunpack.c.l.b16 %v595
    %v627 = vunpack.c.l.b16 %v596
    %v628 = vrot.slane %v621, 7
    %vm629 = vcmask 1041409
    %v630 = vsel %vm629, %v628, %v620
    %v631 = vrot.slane %v622, 6
    %vm632 = vcmask 1042434
    %v633 = vsel %vm632, %v631, %v630
    %v634 = vrot.slane %v623, 5
    %vm635 = vcmask 1043459
    %v636 = vsel %vm635, %v634, %v633
    %v637 = vrot.slane %v624, 4
    %vm638 = vcmask 1044484
    %v639 = vsel %vm638, %v637, %v636
    %v640 = vrot.slane %v625, 3
    %vm641 = vcmask 1045509
    %v642 = vsel %vm641, %v640, %v639
    %v643 = vrot.slane %v626, 2
    %vm644 = vcmask 1046534
    %v645 = vsel %vm644, %v643, %v642
    %v646 = vrot.slane %v627, 1
    %vm647 = vcmask 1047559
    %v648 = vsel %vm647, %v646, %v645
    %v649 = vpack.c.b16 %v648, %v648
    %v658 = vunpack.c.l.b16 %v597
    %v659 = vunpack.c.l.b16 %v598
    %v660 = vunpack.c.l.b16 %v599
    %v661 = vunpack.c.l.b16 %v600
    %v662 = vunpack.c.l.b16 %v601
    %v663 = vunpack.c.l.b16 %v602
    %v664 = vunpack.c.l.b16 %v603
    %v665 = vunpack.c.l.b16 %v604
    %v666 = vpack.c.b16 %v659, %v658
    %v667 = vpack.c.b16 %v661, %v660
    %v668 = vpack.c.b16 %v663, %v662
    %v669 = vpack.c.b16 %v665, %v664
    %v675 = vsel %vm493, %v649, 0
    %677 = vmatprep.subr.bf16.mxu0 0
    %678 = vmatpush1.bf16.msra.mxu0 %v666
    %679 = vmatprep.subr.bf16.mxu0 0
    %680 = vmatpush1.bf16.msra.mxu0 %v667
    %681 = vmatprep.subr.bf16.mxu0 0
    %682 = vmatpush1.bf16.msra.mxu0 %v668
    %683 = vmatprep.subr.bf16.mxu0 0
    %684 = vmatpush1.bf16.msra.mxu0 %v669
    %685 = vmatprep.subr.bf16.mxu0 0
    %686 = vmatpush1.bf16.msra.mxu0 0
    %687 = vmatprep.subr.bf16.mxu0 0
    %688 = vmatpush1.bf16.msra.mxu0 0
    %689 = vmatprep.subr.bf16.mxu0 0
    %690 = vmatpush1.bf16.msra.mxu0 0
    %691 = vmatprep.subr.bf16.mxu0 0
    %692 = vmatpush1.bf16.msra.mxu0 0
    %693 = vmatprep.subr.bf16.mxu0 0
    %694 = vmatpush1.bf16.msra.mxu0 0
    %695 = vmatprep.subr.bf16.mxu0 0
    %696 = vmatpush1.bf16.msra.mxu0 0
    %697 = vmatprep.subr.bf16.mxu0 0
    %698 = vmatpush1.bf16.msra.mxu0 0
    %699 = vmatprep.subr.bf16.mxu0 0
    %700 = vmatpush1.bf16.msra.mxu0 0
    %701 = vmatprep.subr.bf16.mxu0 0
    %702 = vmatpush1.bf16.msra.mxu0 0
    %703 = vmatprep.subr.bf16.mxu0 0
    %704 = vmatpush1.bf16.msra.mxu0 0
    %705 = vmatprep.subr.bf16.mxu0 0
    %706 = vmatpush1.bf16.msra.mxu0 0
    %707 = vmatprep.subr.bf16.mxu0 0
    %708 = vmatpush1.bf16.msra.mxu0 0
    %709 = vmatprep.mubr.bf16.mxu0 0
    %710 = vmatmul.mubr.bf16.gmra.mrb[0].mxu0 %v675
    %v711 = vpop.f32.mrb[0].mxu0
    %v712 = vadd.f32 %v610, %v711
    %v713 = vpop.f32.mrb[0].mxu0
    %v714 = vpop.f32.mrb[0].mxu0
    %v715 = vpop.f32.mrb[0].mxu0
    %716 = vdwg.mxu0
    %v717 = vmax.f32 %v712, 0.0
    %v718 = vpack.c.bf16 %v717, %v717
    %v719 = vld [vmem:[%s5] sm:$0xf]
    %v720 = vld [vmem:[%s5 + $0x4] sm:$0xf]
    %v721 = vld [vmem:[%s5 + $0x8] sm:$0xf]
    %v722 = vld [vmem:[%s5 + $0xc] sm:$0xf]
    %v723 = vld [vmem:[%s5 + $0x10] sm:$0xf]
    %v724 = vld [vmem:[%s5 + $0x14] sm:$0xf]
    %v725 = vld [vmem:[%s5 + $0x18] sm:$0xf]
    %v726 = vld [vmem:[%s5 + $0x1c] sm:$0xf]
    %v727 = vld [vmem:[%s5 + $0x20] sm:$0xf]
    %v728 = vld [vmem:[%s5 + $0x24] sm:$0xf]
    %v729 = vld [vmem:[%s5 + $0x28] sm:$0xf]
    %v730 = vld [vmem:[%s5 + $0x2c] sm:$0xf]
    %v731 = vld [vmem:[%s5 + $0x30] sm:$0xf]
    %v732 = vld [vmem:[%s5 + $0x34] sm:$0xf]
    %v733 = vld [vmem:[%s5 + $0x38] sm:$0xf]
    %v734 = vld [vmem:[%s5 + $0x3c] sm:$0xf]
    %v735 = vld [vmem:[%s6] sm:$0x1]
    %v737 = vlaneseq
    %v738 = vshrl.u32 %v737, 7
    %v739 = vsub.s32 0, %v738
    %v740 = vrot.slane %v735, %v739
    %v758 = vunpack.c.l.b16 %v719
    %v759 = vunpack.c.l.b16 %v720
    %v760 = vunpack.c.l.b16 %v721
    %v761 = vunpack.c.l.b16 %v722
    %v762 = vunpack.c.l.b16 %v723
    %v763 = vunpack.c.l.b16 %v724
    %v764 = vunpack.c.l.b16 %v725
    %v765 = vunpack.c.l.b16 %v726
    %v766 = vunpack.c.l.b16 %v727
    %v767 = vunpack.c.l.b16 %v728
    %v768 = vunpack.c.l.b16 %v729
    %v769 = vunpack.c.l.b16 %v730
    %v770 = vunpack.c.l.b16 %v731
    %v771 = vunpack.c.l.b16 %v732
    %v772 = vunpack.c.l.b16 %v733
    %v773 = vunpack.c.l.b16 %v734
    %v774 = vpack.c.b16 %v759, %v758
    %v775 = vpack.c.b16 %v761, %v760
    %v776 = vpack.c.b16 %v763, %v762
    %v777 = vpack.c.b16 %v765, %v764
    %v778 = vpack.c.b16 %v767, %v766
    %v779 = vpack.c.b16 %v769, %v768
    %v780 = vpack.c.b16 %v771, %v770
    %v781 = vpack.c.b16 %v773, %v772
    %790 = vmatprep.subr.bf16.mxu0 0
    %791 = vmatpush1.bf16.msra.mxu0 %v774
    %792 = vmatprep.subr.bf16.mxu0 0
    %793 = vmatpush1.bf16.msra.mxu0 %v775
    %794 = vmatprep.subr.bf16.mxu0 0
    %795 = vmatpush1.bf16.msra.mxu0 %v776
    %796 = vmatprep.subr.bf16.mxu0 0
    %797 = vmatpush1.bf16.msra.mxu0 %v777
    %798 = vmatprep.subr.bf16.mxu0 0
    %799 = vmatpush1.bf16.msra.mxu0 %v778
    %800 = vmatprep.subr.bf16.mxu0 0
    %801 = vmatpush1.bf16.msra.mxu0 %v779
    %802 = vmatprep.subr.bf16.mxu0 0
    %803 = vmatpush1.bf16.msra.mxu0 %v780
    %804 = vmatprep.subr.bf16.mxu0 0
    %805 = vmatpush1.bf16.msra.mxu0 %v781
    %806 = vmatprep.subr.bf16.mxu0 0
    %807 = vmatpush1.bf16.msra.mxu0 0
    %808 = vmatprep.subr.bf16.mxu0 0
    %809 = vmatpush1.bf16.msra.mxu0 0
    %810 = vmatprep.subr.bf16.mxu0 0
    %811 = vmatpush1.bf16.msra.mxu0 0
    %812 = vmatprep.subr.bf16.mxu0 0
    %813 = vmatpush1.bf16.msra.mxu0 0
    %814 = vmatprep.subr.bf16.mxu0 0
    %815 = vmatpush1.bf16.msra.mxu0 0
    %816 = vmatprep.subr.bf16.mxu0 0
    %817 = vmatpush1.bf16.msra.mxu0 0
    %818 = vmatprep.subr.bf16.mxu0 0
    %819 = vmatpush1.bf16.msra.mxu0 0
    %820 = vmatprep.subr.bf16.mxu0 0
    %821 = vmatpush1.bf16.msra.mxu0 0
    %822 = vmatprep.mubr.bf16.mxu0 0
    %823 = vmatmul.mubr.bf16.gmra.mrb[0].mxu0 %v718
    %v824 = vpop.f32.mrb[0].mxu0
    %v825 = vadd.f32 %v740, %v824
    %v826 = vpop.f32.mrb[0].mxu0
    %v827 = vpop.f32.mrb[0].mxu0
    %v828 = vpop.f32.mrb[0].mxu0
    %829 = vdwg.mxu0
    %830 = vst [vmem:[#allocation2] sm:$0xff] %v825
    // Predicated region
    $region30: #{tpu_custom_call.1} parent=1 // pred_check
      _
    $region31: #{tpu_custom_call.1} parent=1 // pred_check_branch
      %832 = sbr.rel (0) target = $region33
    $region32: #{tpu_custom_call.1} parent=1 // pred_region
      %s834 = ssub.s32 128, 128
      %835 = vsyncadd [#allocation3], %s834
      %s837 = sshll.u32 [#allocation2], 4
      %s838 = int_to_ptr.vmem [resolvable:$true] %s837
      %840 = dma.vmem_to_hbm [thread:$0]  %s838, 128, %s7, [#allocation3]
    $region33: #{tpu_custom_call.1} parent=1 // pred_fallthru
      _
    // Predicated region
    $region34: #{tpu_custom_call.1} parent=1 // pred_check
      _
    $region35: #{tpu_custom_call.1} parent=1 // pred_check_branch
      %842 = sbr.rel (0) target = $region37
    $region36: #{tpu_custom_call.1} parent=1 // pred_region
      %843 = dma.done [#allocation3], 128
    $region37: #{tpu_custom_call.1} parent=1 // pred_fallthru
      _
    %844 = vsyncpa [#allocation3], 1

</llo_original>
